<compile_context>
chip_gen: v7x
topology: tpu7x:2x2x1
jax: 0.10.0
libtpu: 0.0.40
codegen_flags: <defaults>
</compile_context>

<pallas_src>
import jax
import jax.numpy as jnp
from jax.experimental import pallas as pl
from jax.experimental.pallas import tpu as pltpu


def _round_up(x, m):
    return ((x + m - 1) // m) * m


def _cdiv(a, b):
    return (a + b - 1) // b


def _vmem_physical_bytes() -> int:
    try:
        info = pltpu.get_tpu_info()
        return int(getattr(info, "vmem_capacity_bytes", 64 << 20))
    except Exception:
        return 64 << 20  # conservative: assume v7x-class (64 MiB) VMEM


def metric_sum_intersection(pred: jax.Array, gt: jax.Array, *,
                            max_block_lanes=None) -> jax.Array:
    """pred: (N, C, H, W) float; gt: (N, H, W) int. Returns (C,) int32."""
    N, C, H, W = pred.shape
    HW = H * W

    # ---- generation-aware VMEM budget --------------------------------------
    phys = _vmem_physical_bytes()
    if phys >= (128 << 20):                     # v5e / v6e: 128 MiB physical
        vmem_limit = 80 << 20
    else:                                       # v7x (64 MiB) or unknown
        vmem_limit = min(44 << 20, max(32 << 20, (phys * 3) // 4))
    budget = vmem_limit - (4 << 20)             # headroom for misc/compiler

    # ---- spatial tile selection (sized by bytes, balanced across tiles) ----
    pb = jnp.dtype(pred.dtype).itemsize
    # per-lane VMEM cost: 2x pred buffers + int32 acc scratch + 2x gt buffers
    bytes_per_lane = 2 * pb * C + 4 * C + 2 * 4
    thw_max = max(128, (budget // bytes_per_lane) // 128 * 128)
    if max_block_lanes is not None:             # test/tuning hook
        thw_max = max(128, min(thw_max, (int(max_block_lanes) // 128) * 128))

    hw_128 = _round_up(HW, 128)
    if thw_max >= HW:
        THW = HW                                # one full-extent block
        T_total = 1
    else:
        T_total = _cdiv(hw_128, thw_max)
        THW = _round_up(_cdiv(hw_128, T_total), 128)
        T_total = _cdiv(HW, THW)

    S = 2 if T_total >= 2 else 1                # parallel spatial chunks (v7x)
    T_chunk = _cdiv(T_total, S)
    need_mask = (S * T_chunk * THW) != HW       # any padded / OOB lanes?
    t_last = T_total - 1

    pred_r = pred.reshape(N, C, HW)             # pure reshapes: no HBM copy
    gt_r = gt.astype(jnp.int32).reshape(N, 1, HW)

    def kernel(pred_ref, gt_ref, out_ref, acc_ref):
        t = pl.program_id(2)

        @pl.when(t == 0)
        def _():
            acc_ref[...] = jnp.zeros_like(acc_ref)

        p = pred_ref[...]                                       # (C, THW)
        g = gt_ref[...]                                         # (1, THW)

        # argmax over channels with first-occurrence tie-breaking
        cls = jax.lax.broadcasted_iota(jnp.int32, p.shape, 0)   # (C, THW)
        m = jnp.max(p, axis=0, keepdims=True)                   # (1, THW)
        cand = jnp.where(p == m, cls, C)
        am = jnp.min(cand, axis=0, keepdims=True)               # (1, THW)

        ok = am == g                                            # (1, THW)
        if need_mask:
            # mask lanes past the real end of the image (ragged edge tiles /
            # fully out-of-range logical tiles of the last chunk)
            base = (pl.program_id(1) * T_chunk + t) * THW
            lane = jax.lax.broadcasted_iota(jnp.int32, (1, THW), 1)
            ok = jnp.logical_and(ok, base + lane < HW)
        hit = jnp.logical_and(ok, cls == g)                     # (C, THW)

        acc_ref[...] += hit.astype(jnp.int32)                   # pure VPU add

        @pl.when(t == pl.num_programs(2) - 1)
        def _():
            # once-per-(batch, chunk) lane fold -> tiny (C, 1) output block
            out_ref[...] = jnp.sum(acc_ref[...], axis=1, keepdims=True)

    def pred_map(n, s, t):
        return (n, 0, jnp.minimum(s * T_chunk + t, t_last))

    def gt_map(n, s, t):
        return (n, 0, jnp.minimum(s * T_chunk + t, t_last))

    out = pl.pallas_call(
        kernel,
        out_shape=jax.ShapeDtypeStruct((N, S, C, 1), jnp.int32),
        grid_spec=pltpu.PrefetchScalarGridSpec(
            num_scalar_prefetch=0,
            grid=(N, S, T_chunk),
            in_specs=[
                pl.BlockSpec((None, C, THW), pred_map),
                pl.BlockSpec((None, 1, THW), gt_map),
            ],
            out_specs=pl.BlockSpec((None, None, C, 1),
                                   lambda n, s, t: (n, s, 0, 0)),
            scratch_shapes=[pltpu.VMEM((C, THW), jnp.int32)],
        ),
        compiler_params=pltpu.CompilerParams(
            # batch and spatial-chunk axes are independent (megacore
            # shardable); the inner spatial axis is the reduction.
            dimension_semantics=("parallel", "parallel", "arbitrary"),
            vmem_limit_bytes=vmem_limit,
        ),
    )(pred_r, gt_r)

    # final reduction over N*S*C tiny int32 partials
    return jnp.sum(out, axis=(0, 1, 3))
    # TODO(synk): torch returns int64; int32 here can overflow past ~2.1e9
    # matched pixels per class (would need X64 or a split accumulator).


def _reference(pred: jax.Array, gt: jax.Array) -> jax.Array:
    """Pure-JAX reference mirroring the PyTorch module."""
    num_classes = pred.shape[1]
    am = jnp.argmax(pred, axis=1)                               # (N, H, W)
    p_oh = jax.nn.one_hot(am, num_classes, dtype=jnp.int32)
    g_oh = jax.nn.one_hot(gt, num_classes, dtype=jnp.int32)
    inter = jnp.logical_and(p_oh, g_oh)
    return jnp.sum(inter.astype(jnp.int32), axis=(0, 1, 2))     # (C,)


if __name__ == "__main__":
    key = jax.random.PRNGKey(0)
    k1, k2, k3, k4, k5, k6 = jax.random.split(key, 6)

    # Case 1: lane-aligned spatial size, single full tile.
    N, C, H, W = 2, 4, 16, 16
    pred = jax.random.normal(k1, (N, C, H, W), dtype=jnp.float32)
    gt = jax.random.randint(k2, (N, H, W), 0, C, dtype=jnp.int32)
    result = jax.block_until_ready(metric_sum_intersection(pred, gt))
    expected = jax.block_until_ready(_reference(pred, gt))
    assert result.shape == (C,), result.shape
    assert jnp.array_equal(result, expected), (result, expected)

    # Case 2: non-multiple-of-128 spatial size (full-extent, no padding).
    N2, C2, H2, W2 = 2, 5, 15, 15
    pred2 = jax.random.normal(k3, (N2, C2, H2, W2), dtype=jnp.float32)
    gt2 = jax.random.randint(k4, (N2, H2, W2), 0, C2, dtype=jnp.int32)
    result2 = jax.block_until_ready(metric_sum_intersection(pred2, gt2))
    expected2 = jax.block_until_ready(_reference(pred2, gt2))
    assert result2.shape == (C2,), result2.shape
    assert jnp.array_equal(result2, expected2), (result2, expected2)

    # Case 3: force multi-tile + 2-chunk split + ragged edge tile + lane mask.
    N3, C3, H3, W3 = 1, 3, 17, 23    # HW = 391 -> 4 tiles of 128 lanes
    pred3 = jax.random.normal(k5, (N3, C3, H3, W3), dtype=jnp.float32)
    gt3 = jax.random.randint(k6, (N3, H3, W3), 0, C3, dtype=jnp.int32)
    result3 = jax.block_until_ready(
        metric_sum_intersection(pred3, gt3, max_block_lanes=128))
    expected3 = jax.block_until_ready(_reference(pred3, gt3))
    assert result3.shape == (C3,), result3.shape
    assert jnp.array_equal(result3, expected3), (result3, expected3)

    print("KERNEL_OK")
</pallas_src>

<mosaic_0001>
module attributes {stable_mosaic.version = 11 : i64} {
  func.func @kernel(%arg0: i32, %arg1: i32, %arg2: i32, %arg3: memref<1x4x256xf32, #tpu.memory_space<vmem>>, %arg4: memref<1x1x256xi32, #tpu.memory_space<vmem>>, %arg5: memref<1x1x4x1xi32, #tpu.memory_space<vmem>>, %arg6: memref<4x256xi32, #tpu.memory_space<vmem>>) attributes {dimension_semantics = [#tpu.dimension_semantics<parallel>, #tpu.dimension_semantics<parallel>, #tpu.dimension_semantics<arbitrary>], iteration_bounds = array<i64: 2, 1, 1>, scalar_prefetch = 0 : i64, scratch_operands = 1 : i64, tpu.core_type = #tpu.core_type<tc>, window_params = [{transform_indices = @transform_0, window_bounds = array<i64: 1, 4, 256>}, {transform_indices = @transform_1, window_bounds = array<i64: 1, 1, 256>}, {transform_indices = @transform_2, window_bounds = array<i64: 1, 1, 4, 1>}]} {
    %c0_i32 = arith.constant 0 : i32
    %0 = arith.cmpi eq, %arg2, %c0_i32 : i32
    %1 = arith.extui %0 : i1 to i32
    %c0_i32_0 = arith.constant 0 : i32
    %2 = arith.cmpi ne, %1, %c0_i32_0 : i32
    scf.if %2 {
      %c0_i32_13 = arith.constant 0 : i32
      %28 = vector.broadcast %c0_i32_13 : i32 to vector<4x256xi32>
      %c0_14 = arith.constant 0 : index
      %c0_15 = arith.constant 0 : index
      %29 = vector.load %arg6[%c0_14, %c0_15] : memref<4x256xi32, #tpu.memory_space<vmem>>, vector<4x256xi32>
      tpu.vector_store %arg6[%c0_14, %c0_15], %28 {strides = array<i32>} : memref<4x256xi32, #tpu.memory_space<vmem>>, vector<4x256xi32>,
    } else {
    }
    %c0 = arith.constant 0 : index
    %c0_1 = arith.constant 0 : index
    %c0_2 = arith.constant 0 : index
    %3 = vector.load %arg3[%c0, %c0_1, %c0_2] : memref<1x4x256xf32, #tpu.memory_space<vmem>>, vector<1x4x256xf32>
    %4 = vector.shape_cast %3 : vector<1x4x256xf32> to vector<4x256xf32>
    %c0_3 = arith.constant 0 : index
    %c0_4 = arith.constant 0 : index
    %c0_5 = arith.constant 0 : index
    %5 = vector.load %arg4[%c0_3, %c0_4, %c0_5] : memref<1x1x256xi32, #tpu.memory_space<vmem>>, vector<1x1x256xi32>
    %6 = vector.shape_cast %5 : vector<1x1x256xi32> to vector<1x256xi32>
    %7 = tpu.iota {dimensions = array<i32: 0>} : vector<4x256xi32>
    %cst = arith.constant dense<0xFF800000> : vector<256xf32>
    %8 = vector.multi_reduction <maximumf>, %4, %cst [0] : vector<4x256xf32> to vector<256xf32>
    %9 = vector.shape_cast %8 : vector<256xf32> to vector<1x256xf32>
    %10 = vector.broadcast %9 : vector<1x256xf32> to vector<4x256xf32>
    %11 = arith.cmpf oeq, %4, %10 : vector<4x256xf32>
    %c4_i32 = arith.constant 4 : i32
    %12 = vector.broadcast %c4_i32 : i32 to vector<4x256xi32>
    %13 = arith.select %11, %7, %12 : vector<4x256xi1>, vector<4x256xi32>
    %cst_6 = arith.constant dense<2147483647> : vector<256xi32>
    %14 = vector.multi_reduction <minsi>, %13, %cst_6 [0] : vector<4x256xi32> to vector<256xi32>
    %15 = vector.shape_cast %14 : vector<256xi32> to vector<1x256xi32>
    %16 = arith.cmpi eq, %15, %6 : vector<1x256xi32>
    %17 = vector.broadcast %6 : vector<1x256xi32> to vector<4x256xi32>
    %18 = arith.cmpi eq, %7, %17 : vector<4x256xi32>
    %19 = vector.broadcast %16 : vector<1x256xi1> to vector<4x256xi1>
    %20 = arith.andi %19, %18 : vector<4x256xi1>
    %c0_7 = arith.constant 0 : index
    %c0_8 = arith.constant 0 : index
    %21 = vector.load %arg6[%c0_7, %c0_8] : memref<4x256xi32, #tpu.memory_space<vmem>>, vector<4x256xi32>
    %22 = arith.extui %20 : vector<4x256xi1> to vector<4x256xi32>
    %23 = arith.addi %21, %22 : vector<4x256xi32>
    %c0_9 = arith.constant 0 : index
    %c0_10 = arith.constant 0 : index
    %24 = vector.load %arg6[%c0_9, %c0_10] : memref<4x256xi32, #tpu.memory_space<vmem>>, vector<4x256xi32>
    tpu.vector_store %arg6[%c0_9, %c0_10], %23 {strides = array<i32>} : memref<4x256xi32, #tpu.memory_space<vmem>>, vector<4x256xi32>,
    %c0_i32_11 = arith.constant 0 : i32
    %25 = arith.cmpi eq, %arg2, %c0_i32_11 : i32
    %26 = arith.extui %25 : i1 to i32
    %c0_i32_12 = arith.constant 0 : i32
    %27 = arith.cmpi ne, %26, %c0_i32_12 : i32
    scf.if %27 {
      %c0_13 = arith.constant 0 : index
      %c0_14 = arith.constant 0 : index
      %28 = vector.load %arg6[%c0_13, %c0_14] : memref<4x256xi32, #tpu.memory_space<vmem>>, vector<4x256xi32>
      %cst_15 = arith.constant dense<0> : vector<4xi32>
      %29 = vector.multi_reduction <add>, %28, %cst_15 [1] : vector<4x256xi32> to vector<4xi32>
      %30 = vector.shape_cast %29 : vector<4xi32> to vector<4x1xi32>
      %c0_16 = arith.constant 0 : index
      %c0_17 = arith.constant 0 : index
      %c0_18 = arith.constant 0 : index
      %c0_19 = arith.constant 0 : index
      %31 = vector.load %arg5[%c0_16, %c0_17, %c0_18, %c0_19] : memref<1x1x4x1xi32, #tpu.memory_space<vmem>>, vector<1x1x4x1xi32>
      %32 = vector.shape_cast %31 : vector<1x1x4x1xi32> to vector<4x1xi32>
      %33 = vector.shape_cast %30 : vector<4x1xi32> to vector<1x1x4x1xi32>
      tpu.vector_store %arg5[%c0_16, %c0_17, %c0_18, %c0_19], %33 {strides = array<i32>} : memref<1x1x4x1xi32, #tpu.memory_space<vmem>>, vector<1x1x4x1xi32>,
    } else {
    }
    return
  }
  func.func @transform_0(%arg0: i32, %arg1: i32, %arg2: i32) -> (i32, i32, i32) {
    %c1_i32 = arith.constant 1 : i32
    %0 = arith.muli %arg1, %c1_i32 : i32
    %1 = arith.addi %0, %arg2 : i32
    %c0_i32 = arith.constant 0 : i32
    %2 = arith.minsi %1, %c0_i32 : i32
    %c0_i32_0 = arith.constant 0 : i32
    %c0_i32_1 = arith.constant 0 : i32
    return %arg0, %c0_i32_0, %2 : i32, i32, i32
  }
  func.func @transform_1(%arg0: i32, %arg1: i32, %arg2: i32) -> (i32, i32, i32) {
    %c1_i32 = arith.constant 1 : i32
    %0 = arith.muli %arg1, %c1_i32 : i32
    %1 = arith.addi %0, %arg2 : i32
    %c0_i32 = arith.constant 0 : i32
    %2 = arith.minsi %1, %c0_i32 : i32
    %c0_i32_0 = arith.constant 0 : i32
    %c0_i32_1 = arith.constant 0 : i32
    return %arg0, %c0_i32_0, %2 : i32, i32, i32
  }
  func.func @transform_2(%arg0: i32, %arg1: i32, %arg2: i32) -> (i32, i32, i32, i32) {
    %c0_i32 = arith.constant 0 : i32
    %c0_i32_0 = arith.constant 0 : i32
    %c0_i32_1 = arith.constant 0 : i32
    return %arg0, %arg1, %c0_i32, %c0_i32_0 : i32, i32, i32, i32
  }
}

</mosaic_0001>

<llo_original>
// kernel: tpu_custom_call.1
$region0: #{tpu_custom_call.1}
  #allocation0 [shape = 'u32[]', space=smem, size = 0x4, offset = 0x4, fixed_abs, tag = 'smem constant byte address 0x4 - core index']
  #allocation1 [shape = 'u32[144,128]{1,0:T(1,128)}', space=vmem, size = 0x12000, scoped, tag = 'internal scratch']
  #allocation2 [shape = 's32[4,256]{1,0:T(4,128)}', space=vmem, size = 0x1000, scoped, tag = 'scratch operand']
  %s0 = inlined_call_operand.hbm [shape: f32[2,4,256], index: 0, kind: input, shape index: {}]
  %s1 = inlined_call_operand.hbm [shape: s32[2,1,256], index: 1, kind: input, shape index: {}]
  %s2 = inlined_call_operand.vmem [shape: s32[2,1,4,1], index: 2, kind: output, shape index: {}]
  %s3 = sld [smem:[#allocation0]]
  $region57: #{tpu_custom_call.1} parent=0
    _
  %s5 = ssub.s32 1, %s3
  %s6 = scalar_select 0, %s5, %s3
  $region1: #{tpu_custom_call.1} parent=0
    #allocation3 [shape = 'u8[8192]{0}', space=vmem, size = 0x2000, scoped, tag = 'input window, operand 0']
    #allocation4 [shape = 's32[2]{0}', space=sflag, size = 0x8, scoped, tag = 'scoped memory for tpu_custom_call.1']
    #allocation5 [shape = 'u8[2048]{0}', space=vmem, size = 0x800, scoped, tag = 'input window, operand 1']
    #allocation6 [shape = 's32[2]{0}', space=sflag, size = 0x8, scoped, tag = 'scoped memory for tpu_custom_call.1']
    %7 = vsyncpa [#allocation4], 0
    %s8 = scalar_lea.sflag [#allocation4], 1
    %9 = vsyncpa %s8, 0
    %10 = vsyncpa [#allocation6], 0
    %s11 = scalar_lea.sflag [#allocation6], 1
    %12 = vsyncpa %s11, 0
    loop: start=0, step=1, limit=4
    $region2: #{tpu_custom_call.1} parent=1 // loop_pre_header
      _
    $region3: #{tpu_custom_call.1} parent=1 // loop_header
      %s14 = sphi 0, %s18
      %p15 = scmp.ge.s32.totalorder %s14, 4
      %s21 = sphi 0, %s40
      %s22 = sphi 0, %s36
      %s23 = sphi 0, %s32
      %s24 = sphi 0, %s21
      %s25 = sphi 0, %s22
      %s26 = sphi 0, %s23
      %s27 = sphi 0, %s24
      %s28 = sphi 0, %s25
      %s29 = sphi 0, %s26
      %s51 = sphi 0, %s53
      %s54 = sphi 0, %s51
      %s55 = sphi 0, %s54
      %s71 = sphi 0, %s55
      %s85 = sphi 0, %s87
      %s88 = sphi 0, %s85
      %s89 = sphi 0, %s88
      %s105 = sphi 0, %s89
      %s113 = sphi 0, %s115
      %s116 = sphi 0, %s113
      %s117 = sphi 0, %s116
      %s133 = sphi 0, %s117
    $region4: #{tpu_custom_call.1} parent=1 // loop_header_branch
      %17 = sbr.rel (%p15) target = $region8
    $region5: #{tpu_custom_call.1} parent=1 // loop_body
      %s19 = ssub.s32 %s14, 1
      %s20 = ssub.s32 %s14, 2
      %s30 = sadd.s32 1, %s23
      %p31 = scmp.ge.s32.totalorder %s30, 1
      %s32 = scalar_select %p31, 0, %s30
      %s33 = sadd.s32 1, %s22
      %s34 = scalar_select %p31, %s33, %s22
      %p35 = scmp.ge.s32.totalorder %s34, 1
      %s36 = scalar_select %p35, 0, %s34
      %s37 = sadd.s32 1, %s21
      %s38 = scalar_select %p35, %s37, %s21
      %p39 = scmp.ge.s32.totalorder %s38, 2
      %s40 = scalar_select %p39, 0, %s38
      %s41 = sadd.s32 %s22, %s23
      %p42 = scmp.lt.s32.totalorder %s41, 0
      %s43 = scalar_select %p42, %s41, 0
      %s44 = sadd.s32 %s36, %s32
      %p45 = scmp.lt.s32.totalorder %s44, 0
      %s46 = scalar_select %p45, %s44, 0
      %s47 = ssub.s32 %s21, %s40
      %s48 = ssub.s32 %s43, %s46
      %s49 = sor.u32 %s47, %s48
      %p50 = scmp.eq.s32.totalorder %s49, 0
      %s52 = sadd.s32 %s51, 1
      %s53 = scalar_select %p50, %s51, %s52
      %p56 = pneg %p50
      %p57 = scmp.eq.s32.totalorder %s14, 1
      %p58 = por %p56, %p57
      %p59 = scmp.ne.s32.totalorder %s51, %s54
      %p60 = scmp.eq.s32.totalorder %s14, 0
      %p61 = por %p59, %p60
      %p62 = scmp.ne.s32.totalorder %s51, %s54
      %p63 = scmp.eq.s32.totalorder %s19, 1
      %p64 = por %p62, %p63
      %p65 = scmp.ne.s32.totalorder %s54, %s55
      %p66 = scmp.eq.s32.totalorder %s19, 0
      %p67 = por %p65, %p66
      %p68 = scmp.ne.s32.totalorder %s54, %s55
      %p69 = scmp.eq.s32.totalorder %s20, 1
      %p70 = por %p68, %p69
      %p72 = scmp.ne.s32.totalorder %s55, %s71
      %p73 = scmp.eq.s32.totalorder %s20, 0
      %p74 = por %p72, %p73
      %s75 = sadd.s32 %s22, %s23
      %p76 = scmp.lt.s32.totalorder %s75, 0
      %s77 = scalar_select %p76, %s75, 0
      %s78 = sadd.s32 %s36, %s32
      %p79 = scmp.lt.s32.totalorder %s78, 0
      %s80 = scalar_select %p79, %s78, 0
      %s81 = ssub.s32 %s21, %s40
      %s82 = ssub.s32 %s77, %s80
      %s83 = sor.u32 %s81, %s82
      %p84 = scmp.eq.s32.totalorder %s83, 0
      %s86 = sadd.s32 %s85, 1
      %s87 = scalar_select %p84, %s85, %s86
      %p90 = pneg %p84
      %p91 = scmp.eq.s32.totalorder %s14, 1
      %p92 = por %p90, %p91
      %p93 = scmp.ne.s32.totalorder %s85, %s88
      %p94 = scmp.eq.s32.totalorder %s14, 0
      %p95 = por %p93, %p94
      %p96 = scmp.ne.s32.totalorder %s85, %s88
      %p97 = scmp.eq.s32.totalorder %s19, 1
      %p98 = por %p96, %p97
      %p99 = scmp.ne.s32.totalorder %s88, %s89
      %p100 = scmp.eq.s32.totalorder %s19, 0
      %p101 = por %p99, %p100
      %p102 = scmp.ne.s32.totalorder %s88, %s89
      %p103 = scmp.eq.s32.totalorder %s20, 1
      %p104 = por %p102, %p103
      %p106 = scmp.ne.s32.totalorder %s89, %s105
      %p107 = scmp.eq.s32.totalorder %s20, 0
      %p108 = por %p106, %p107
      %s109 = ssub.s32 %s21, %s40
      %s110 = ssub.s32 %s22, %s36
      %s111 = sor.u32 %s109, %s110
      %p112 = scmp.eq.s32.totalorder %s111, 0
      %s114 = sadd.s32 %s113, 1
      %s115 = scalar_select %p112, %s113, %s114
      %p118 = pneg %p112
      %p119 = scmp.eq.s32.totalorder %s14, 1
      %p120 = por %p118, %p119
      %p121 = scmp.ne.s32.totalorder %s113, %s116
      %p122 = scmp.eq.s32.totalorder %s14, 0
      %p123 = por %p121, %p122
      %p124 = scmp.ne.s32.totalorder %s113, %s116
      %p125 = scmp.eq.s32.totalorder %s19, 1
      %p126 = por %p124, %p125
      %p127 = scmp.ne.s32.totalorder %s116, %s117
      %p128 = scmp.eq.s32.totalorder %s19, 0
      %p129 = por %p127, %p128
      %p130 = scmp.ne.s32.totalorder %s116, %s117
      %p131 = scmp.eq.s32.totalorder %s20, 1
      %p132 = por %p130, %p131
      %p134 = scmp.ne.s32.totalorder %s117, %s133
      %p135 = scmp.eq.s32.totalorder %s20, 0
      %p136 = por %p134, %p135
      %p137 = scmp.le.s32.totalorder 1, %s14
      %p138 = scmp.lt.s32.totalorder %s14, 3
      %p139 = pnand %p137, %p138
      %p140 = pneg %p139
      // Predicated region
      $region9: #{tpu_custom_call.1} parent=5 // pred_check
        _
      $region10: #{tpu_custom_call.1} parent=5 // pred_check_branch
        %142 = sbr.rel (%p139) target = $region12
      $region11: #{tpu_custom_call.1} parent=5 // pred_region
        %s143 = ssub.s32 %s14, 1
      $region12: #{tpu_custom_call.1} parent=5 // pred_fallthru
        _
      %p144 = scmp.lt.s32.totalorder %s14, 2
      // Predicated region
      $region13: #{tpu_custom_call.1} parent=5 // pred_check
        %p145 = pneg %p144
      $region14: #{tpu_custom_call.1} parent=5 // pred_check_branch
        %147 = sbr.rel (%p145) target = $region16
      $region15: #{tpu_custom_call.1} parent=5 // pred_region
        // Predicated region
        $region17: #{tpu_custom_call.1} parent=15 // pred_check
          %p148 = pneg %p61
        $region18: #{tpu_custom_call.1} parent=15 // pred_check_branch
          %150 = sbr.rel (%p148) target = $region20
        $region19: #{tpu_custom_call.1} parent=15 // pred_region
          %s151 = sand.u32 %s51, 1
          %s152 = scalar_lea.sflag [#allocation4], %s151
          %s153 = sand.u32 %s51, 1
          %s154 = smul.addr %s153, 8
          %s155 = scalar_lea.vmem [#allocation3], %s154
          %s156 = sadd.s32 %s22, %s23
          %p157 = scmp.lt.s32.totalorder %s156, 0
          %s158 = scalar_select %p157, %s156, 0
          %s159 = smul.u32 2, %s158
          %s161 = ssub.s32 128, 128
          %162 = vsyncadd %s152, %s161
          %s163 = smul.addr %s21, 2
          %s164 = sadd.s32 %s159, %s163
          %s165 = smul.addr %s164, 64
          %s166 = scalar_lea.hbm %s0, %s165
          %s168 = sshll.u32 %s155, 4
          %s169 = int_to_ptr.vmem [resolvable:$true] %s168
          %171 = dma.hbm_to_vmem [thread:$0]  %s166, 128, %s169, %s152
        $region20: #{tpu_custom_call.1} parent=15 // pred_fallthru
          _
        // Predicated region
        $region21: #{tpu_custom_call.1} parent=15 // pred_check
          %p172 = pneg %p95
        $region22: #{tpu_custom_call.1} parent=15 // pred_check_branch
          %174 = sbr.rel (%p172) target = $region24
        $region23: #{tpu_custom_call.1} parent=15 // pred_region
          %s175 = sand.u32 %s85, 1
          %s176 = scalar_lea.sflag [#allocation6], %s175
          %s177 = sand.u32 %s85, 1
          %s178 = smul.addr %s177, 2
          %s179 = scalar_lea.vmem [#allocation5], %s178
          %s180 = sadd.s32 %s22, %s23
          %p181 = scmp.lt.s32.totalorder %s180, 0
          %s182 = scalar_select %p181, %s180, 0
          %s183 = smul.u32 2, %s182
          %s185 = ssub.s32 32, 32
          %186 = vsyncadd %s176, %s185
          %s187 = smul.addr %s21, 2
          %s188 = sadd.s32 %s183, %s187
          %s189 = smul.addr %s188, 16
          %s190 = scalar_lea.hbm %s1, %s189
          %s192 = sshll.u32 %s179, 4
          %s193 = int_to_ptr.vmem [resolvable:$true] %s192
          %195 = dma.hbm_to_vmem [thread:$0]  %s190, 32, %s193, %s176
        $region24: #{tpu_custom_call.1} parent=15 // pred_fallthru
          _
      $region16: #{tpu_custom_call.1} parent=5 // pred_fallthru
        _
      %p196 = scmp.le.s32.totalorder 1, %s14
      %p197 = scmp.lt.s32.totalorder %s14, 3
      %p198 = pnand %p196, %p197
      %p199 = pneg %p198
      // Predicated region
      $region25: #{tpu_custom_call.1} parent=5 // pred_check
        _
      $region26: #{tpu_custom_call.1} parent=5 // pred_check_branch
        %201 = sbr.rel (%p198) target = $region28
      $region27: #{tpu_custom_call.1} parent=5 // pred_region
        %s202 = ssub.s32 %s14, 1
        %s203 = sand.u32 %s54, 1
        %s204 = scalar_lea.sflag [#allocation4], %s203
        %s205 = sand.u32 %s54, 1
        %s206 = smul.addr %s205, 8
        %s207 = scalar_lea.vmem [#allocation3], %s206
        // Predicated region
        $region29: #{tpu_custom_call.1} parent=27 // pred_check
          %p208 = pneg %p67
        $region30: #{tpu_custom_call.1} parent=27 // pred_check_branch
          %210 = sbr.rel (%p208) target = $region32
        $region31: #{tpu_custom_call.1} parent=27 // pred_region
          %211 = dma.done %s204, 128
        $region32: #{tpu_custom_call.1} parent=27 // pred_fallthru
          _
        %s212 = sand.u32 %s88, 1
        %s213 = scalar_lea.sflag [#allocation6], %s212
        %s214 = sand.u32 %s88, 1
        %s215 = smul.addr %s214, 2
        %s216 = scalar_lea.vmem [#allocation5], %s215
        // Predicated region
        $region33: #{tpu_custom_call.1} parent=27 // pred_check
          %p217 = pneg %p101
        $region34: #{tpu_custom_call.1} parent=27 // pred_check_branch
          %219 = sbr.rel (%p217) target = $region36
        $region35: #{tpu_custom_call.1} parent=27 // pred_region
          %220 = dma.done %s213, 32
        $region36: #{tpu_custom_call.1} parent=27 // pred_fallthru
          _
        %s221 = sand.u32 %s54, 1
        %s222 = scalar_lea.sflag [#allocation4], %s221
        %s223 = sand.u32 %s54, 1
        %s224 = smul.addr %s223, 8
        %s225 = scalar_lea.vmem [#allocation3], %s224
        %p226 = pneg %p67
        %p227 = pneg %p64
        %s228 = sand.u32 %s88, 1
        %s229 = scalar_lea.sflag [#allocation6], %s228
        %s230 = sand.u32 %s88, 1
        %s231 = smul.addr %s230, 2
        %s232 = scalar_lea.vmem [#allocation5], %s231
        %p233 = pneg %p101
        %p234 = pneg %p98
        %p235 = pneg %p129
        %p236 = pneg %p126
        %p237 = scmp.lt.s32.totalorder %s24, 1
        %s238 = scalar_select %p237, %s24, 1
        %p239 = scmp.lt.s32.totalorder %s25, 0
        %s240 = scalar_select %p239, %s25, 0
        %s241 = sadd.s32 %s240, %s238
        %s242 = smul.addr %s241, 4
        %s243 = scalar_lea.vmem %s2, %s242
        %s244 = sadd.s32 %s25, %s26
        %p245 = scmp.lt.s32.totalorder %s244, 0
        %s246 = scalar_select %p245, %s244, 0
        %s247 = smul.u32 2, %s246
        %s248 = sadd.s32 %s25, %s26
        %p249 = scmp.lt.s32.totalorder %s248, 0
        %s250 = scalar_select %p249, %s248, 0
        %s251 = smul.u32 2, %s250
        %p252 = scmp.lt.s32.totalorder %s24, 1
        %s253 = scalar_select %p252, %s24, 1
        %p254 = scmp.lt.s32.totalorder %s25, 0
        %s255 = scalar_select %p254, %s25, 0
        %s256 = sadd.s32 %s255, %s253
        %s257 = smul.addr %s256, 4
        %s258 = scalar_lea.vmem %s2, %s257
        %p259 = scmp.eq.s32.totalorder %s26, 0
        // Predicated region
        $region37: #{tpu_custom_call.1} parent=27 // pred_check
          %p260 = pneg %p259
        $region38: #{tpu_custom_call.1} parent=27 // pred_check_branch
          %262 = sbr.rel (%p260) target = $region40
        $region39: #{tpu_custom_call.1} parent=27 // pred_region
          %263 = vst [vmem:[#allocation2] sm:$0xff] 0
        $region40: #{tpu_custom_call.1} parent=27 // pred_fallthru
          _
        %v264 = vld [vmem:[%s207] sm:$0xff]
        %v265 = vld [vmem:[%s216] sm:$0x3]
        %v266 = vlaneseq
        %v267 = vshrl.u32 %v266, 7
        %v269 = vcombine.high %v264, %v264
        %vm271 = vcmask 1043456
        %v272 = vsel %vm271, %v264, -inf
        %v273 = vrot.slane %v272, 4
        %v274 = vmax.f32 %v272, %v273
        %v275 = vrot.slane %v274, 2
        %v276 = vmax.f32 %v274, %v275
        %v277 = vrot.slane %v276, 1
        %v278 = vmax.f32 %v276, %v277
        %v279 = vsel %vm271, %v269, -inf
        %v280 = vrot.slane %v279, 4
        %v281 = vmax.f32 %v279, %v280
        %v282 = vrot.slane %v281, 2
        %v283 = vmax.f32 %v281, %v282
        %v284 = vrot.slane %v283, 1
        %v285 = vmax.f32 %v283, %v284
        %v288 = vcombine.low %v278, %v285
        %vm290 = vcmp.eq.f32.partialorder %v264, %v288
        %v292 = vunpack.c.l.s4 839922192
        %v293 = vunpack.c.0.s8 %v292
        %v294 = vlaneseq
        %v295 = vshrl.u32 %v294, 7
        %v296 = vsub.s32 %v293, %v295
        %v297 = vrot.slane %v267, %v296
        %v298 = vsel %vm290, %v297, 4
        %v299 = vcombine.high %v298, %v298
        %v300 = vsel %vm271, %v298, 2147483647
        %v301 = vrot.slane %v300, 4
        %vm302 = vcmp.lt.s32.totalorder %v300, %v301
        %v303 = vsel %vm302, %v300, %v301
        %v304 = vrot.slane %v303, 2
        %vm305 = vcmp.lt.s32.totalorder %v303, %v304
        %v306 = vsel %vm305, %v303, %v304
        %v307 = vrot.slane %v306, 1
        %vm308 = vcmp.lt.s32.totalorder %v306, %v307
        %v309 = vsel %vm308, %v306, %v307
        %v310 = vsel %vm271, %v299, 2147483647
        %v311 = vrot.slane %v310, 4
        %vm312 = vcmp.lt.s32.totalorder %v310, %v311
        %v313 = vsel %vm312, %v310, %v311
        %v314 = vrot.slane %v313, 2
        %vm315 = vcmp.lt.s32.totalorder %v313, %v314
        %v316 = vsel %vm315, %v313, %v314
        %v317 = vrot.slane %v316, 1
        %vm318 = vcmp.lt.s32.totalorder %v316, %v317
        %v319 = vsel %vm318, %v316, %v317
        %v320 = vlaneseq
        %v321 = vshrl.u32 %v320, 7
        %v322 = vsub.s32 0, %v321
        %v323 = vrot.slane %v265, %v322
        %v324 = vlaneseq
        %v325 = vshrl.u32 %v324, 7
        %v326 = vsub.s32 1, %v325
        %v327 = vrot.slane %v265, %v326
        %vm328 = vcmp.eq.s32.totalorder %v309, %v323
        %vm329 = vcmp.eq.s32.totalorder %v319, %v327
        %vm330 = vcmp.eq.s32.totalorder %v267, %v323
        %vm331 = vcmp.eq.s32.totalorder %v267, %v327
        %v332 = vsel %vm328, 1, 0
        %v333 = vsel %vm329, 1, 0
        %v334 = vlaneseq
        %v335 = vshrl.u32 %v334, 7
        %v336 = vsub.s32 0, %v335
        %v337 = vrot.slane %v332, %v336
        %v338 = vlaneseq
        %v339 = vshrl.u32 %v338, 7
        %v340 = vsub.s32 0, %v339
        %v341 = vrot.slane %v333, %v340
        %vm342 = vcmp.eq.s32.totalorder %v337, 1
        %vm343 = vcmp.eq.s32.totalorder %v341, 1
        %vm344 = vmand %vm342, %vm330
        %vm345 = vmand %vm343, %vm331
        %v346 = vld [vmem:[#allocation2] sm:$0xff]
        %v347 = vsel %vm344, 1, 0
        %v348 = vsel %vm345, 1, 0
        %v349 = vcombine.low %v347, %v348
        %v350 = vadd.s32 %v346, %v349
        %351 = vst [vmem:[#allocation2] sm:$0xff] %v350
        // Predicated region
        $region41: #{tpu_custom_call.1} parent=27 // pred_check
          %p352 = pneg %p259
        $region42: #{tpu_custom_call.1} parent=27 // pred_check_branch
          %354 = sbr.rel (%p352) target = $region44
        $region43: #{tpu_custom_call.1} parent=27 // pred_region
          %v355 = vld [vmem:[#allocation2] sm:$0xff]
          %v356 = vcombine.high %v355, %v355
          %v357 = vsel %vm271, %v355, 0
          %v358 = vsel %vm271, %v356, 0
          %v359 = vadd.s32 %v357, %v358
          %v360 = vand.u32 %v359, 65535
          %v361 = vshrl.u32 %v359, 16
          %v362 = vcvt.s32.f32 %v360
          %v363 = vcvt.s32.f32 %v361
          %364 = vadd.xlane.f32.xlu0 %v362
          %v365 = vpop.xlane.xlu0 %364
          %366 = vadd.xlane.f32.xlu0 %v363
          %v367 = vpop.xlane.xlu0 %366
          %v368 = vcvt.f32.s32 %v365
          %v369 = vcvt.f32.s32 %v367
          %v370 = vshll.u32 %v369, 16
          %v371 = vadd.s32 %v370, %v368
          %vm372 = vcmask 3072
          %373 = vst.msk [vmem:[%s258] sm:$0xf] %vm372, %v371
        $region44: #{tpu_custom_call.1} parent=27 // pred_fallthru
          _
        %p374 = scmp.lt.s32.totalorder %s24, 1
        %s375 = scalar_select %p374, %s24, 1
        %p376 = scmp.lt.s32.totalorder %s25, 0
        %s377 = scalar_select %p376, %s25, 0
        %s378 = sadd.s32 %s377, %s375
        %s379 = smul.addr %s378, 4
        %s380 = scalar_lea.vmem %s2, %s379
        // Predicated region
        $region45: #{tpu_custom_call.1} parent=27 // pred_check
          %p381 = pneg %p126
        $region46: #{tpu_custom_call.1} parent=27 // pred_check_branch
          %383 = sbr.rel (%p381) target = $region48
        $region47: #{tpu_custom_call.1} parent=27 // pred_region
          _
        $region48: #{tpu_custom_call.1} parent=27 // pred_fallthru
          _
      $region28: #{tpu_custom_call.1} parent=5 // pred_fallthru
        _
      %p384 = scmp.le.s32.totalorder 2, %s14
      // Predicated region
      $region49: #{tpu_custom_call.1} parent=5 // pred_check
        %p385 = pneg %p384
      $region50: #{tpu_custom_call.1} parent=5 // pred_check_branch
        %387 = sbr.rel (%p385) target = $region52
      $region51: #{tpu_custom_call.1} parent=5 // pred_region
        %s388 = ssub.s32 %s14, 2
        // Predicated region
        $region53: #{tpu_custom_call.1} parent=51 // pred_check
          %p389 = pneg %p132
        $region54: #{tpu_custom_call.1} parent=51 // pred_check_branch
          %391 = sbr.rel (%p389) target = $region56
        $region55: #{tpu_custom_call.1} parent=51 // pred_region
          %p392 = scmp.lt.s32.totalorder %s27, 1
          %s393 = scalar_select %p392, %s27, 1
          %p394 = scmp.lt.s32.totalorder %s28, 0
          %s395 = scalar_select %p394, %s28, 0
          %s396 = sadd.s32 %s395, %s393
          %s397 = smul.addr %s396, 4
          %s398 = scalar_lea.vmem %s2, %s397
        $region56: #{tpu_custom_call.1} parent=51 // pred_fallthru
          _
      $region52: #{tpu_custom_call.1} parent=5 // pred_fallthru
        _
    $region6: #{tpu_custom_call.1} parent=1 // loop_footer
      %s18 = sadd.s32 1, %s14
    $region7: #{tpu_custom_call.1} parent=1 // loop_footer_branch
      %13 = sbr.rel target = $region3
    $region8: #{tpu_custom_call.1} parent=1 // loop_exit
      _
    %399 = vsyncpa [#allocation4], 1
    %s400 = scalar_lea.sflag [#allocation4], 1
    %401 = vsyncpa %s400, 1
    %402 = vsyncpa [#allocation6], 1
    %s403 = scalar_lea.sflag [#allocation6], 1
    %404 = vsyncpa %s403, 1

</llo_original>
